<compile_context>
chip_gen: v6e
topology: v6e:2x2x1
jax: 0.10.0
libtpu: 0.0.40
codegen_flags: <defaults>
</compile_context>

<pallas_src>
import jax
import jax.numpy as jnp
from jax.experimental import pallas as pl
from jax.experimental.pallas import tpu as pltpu


def _waveform_cond_kernel(nvalid_ref, x_ref, w_ref, b_ref, out_ref):
    """nvalid: SMEM [B] i32; x: [C, tile_t, ds] bf16; w: [C, ds, n_pad] bf16;
    b: [1, n_pad] f32; out: [tile_t, n_pad] f32."""
    b = pl.program_id(0)
    ti = pl.program_id(1)
    C, tile_t, _ = x_ref.shape

    # Fused (patchify @ W_emb) @ W_out as a single projection, accumulated over
    # channels so the native HBM layout of the waveform is consumed directly.
    acc = jnp.dot(x_ref[0], w_ref[0], preferred_element_type=jnp.float32)
    for c in range(1, C):
        acc = acc + jnp.dot(x_ref[c], w_ref[c], preferred_element_type=jnp.float32)

    y = acc + b_ref[...]                                        # [tile_t, n_pad] f32

    # Row-validity mask: frame_index < lengths/ds  (== frame_index < ceil(.) for ints).
    row = jax.lax.broadcasted_iota(jnp.int32, (tile_t, 1), 0) + ti * tile_t
    valid = (row < nvalid_ref[b]).astype(jnp.float32)            # [tile_t, 1]
    out_ref[...] = y * valid


def waveform_conditioner_forward(wav, lengths, w_emb, w_out_t, b_out, ds_factor,
                                 tile_t=None):
    """wav: [B, C, L] f32; lengths: [B] f32 (in raw samples).
    Returns (embeds [B, T, out_dim] f32, mask [B, T] i32)."""
    B, C, L = wav.shape
    ds = ds_factor
    T = L // ds
    out_dim = w_out_t.shape[1]
    n_pad = ((out_dim + 127) // 128) * 128        # lane-dense output width

    if tile_t is None:
        tile_t = T if T <= 512 else 512           # amortize per-step overhead; VMEM-safe on v7x
    assert T % tile_t == 0, "demo wrapper assumes T divisible by tile_t"

    # Collapse the two projections and pad the lane dim (zeros past out_dim).
    w_comb = jnp.dot(w_emb, w_out_t)                                     # [C*ds, out_dim] f32
    w_comb = jnp.pad(w_comb, ((0, 0), (0, n_pad - out_dim)))
    w_comb = w_comb.reshape(C, ds, n_pad).astype(jnp.bfloat16)           # per-channel slabs
    bias_p = jnp.pad(b_out, (0, n_pad - out_dim)).reshape(1, n_pad).astype(jnp.float32)

    # Contiguous reshape only -- no XLA transpose, no extra HBM round-trip.
    x = wav.reshape(B, C, T, ds).astype(jnp.bfloat16)

    # Float division as in the original module; convert to an int threshold
    # (t < eff  <=>  t < ceil(eff) for non-negative integer t).
    eff_len = lengths.astype(jnp.float32) / jnp.float32(ds)
    n_valid = jnp.ceil(eff_len).astype(jnp.int32)

    out_padded = pl.pallas_call(
        _waveform_cond_kernel,
        out_shape=jax.ShapeDtypeStruct((B, T, n_pad), jnp.float32),
        grid_spec=pltpu.PrefetchScalarGridSpec(
            num_scalar_prefetch=1,                 # n_valid -> SMEM before the grid
            grid=(B, T // tile_t),
            in_specs=[
                pl.BlockSpec((None, C, tile_t, ds), lambda b, ti, nv: (b, 0, ti, 0)),
                pl.BlockSpec((C, ds, n_pad), lambda b, ti, nv: (0, 0, 0)),
                pl.BlockSpec((1, n_pad), lambda b, ti, nv: (0, 0)),
            ],
            out_specs=pl.BlockSpec((None, tile_t, n_pad), lambda b, ti, nv: (b, ti, 0)),
        ),
        compiler_params=pltpu.CompilerParams(
            dimension_semantics=("parallel", "parallel")),
    )(n_valid, x, w_comb, bias_p)

    embeds = out_padded[..., :out_dim]
    # [B, T] mask is lane-sparse and essentially free in plain XLA; keeping it out
    # of the kernel avoids a masked partial-store output stage.
    mask = (jnp.arange(T, dtype=jnp.float32)[None, :] < eff_len[:, None]).astype(jnp.int32)
    return embeds, mask


def _reference_forward(wav, lengths, w_emb, w_out_t, b_out, ds_factor):
    B, C, L = wav.shape
    T = L // ds_factor
    frames = wav.reshape(B, C, T, ds_factor).transpose(0, 2, 1, 3).reshape(B, T, C * ds_factor)
    h = frames @ w_emb
    y = h @ w_out_t + b_out[None, None, :]
    eff = lengths / ds_factor
    mask = (jnp.arange(T, dtype=jnp.float32)[None, :] < eff[:, None]).astype(jnp.int32)
    return y * mask[..., None].astype(y.dtype), mask


if __name__ == "__main__":
    # Small shapes consistent with the module.
    B, C, L = 2, 4, 128          # waveform [B, C, L]
    ds_factor = 16               # _downsampling_factor()
    T = L // ds_factor           # 8 frames
    dim = 32                     # internal representation dim
    out_dim = 16                 # output_dim of output_proj

    key = jax.random.PRNGKey(0)
    k_wav, k_emb, k_w, k_b, _ = jax.random.split(key, 5)

    wav = jax.random.normal(k_wav, (B, C, L), dtype=jnp.float32)
    w_emb = jax.random.normal(k_emb, (C * ds_factor, dim), dtype=jnp.float32) * 0.05
    w_out_t = jax.random.normal(k_w, (dim, out_dim), dtype=jnp.float32) * 0.1   # Linear weight, pre-transposed
    b_out = jax.random.normal(k_b, (out_dim,), dtype=jnp.float32) * 0.01
    # Valid lengths in raw samples (one batch element partially padded).
    lengths = jnp.array([L, 0.55 * L], dtype=jnp.float32)

    embeds, mask = waveform_conditioner_forward(wav, lengths, w_emb, w_out_t, b_out, ds_factor)
    embeds = jax.block_until_ready(embeds)
    mask = jax.block_until_ready(mask)

    ref_embeds, ref_mask = _reference_forward(wav, lengths, w_emb, w_out_t, b_out, ds_factor)
    assert embeds.shape == (B, T, out_dim) and mask.shape == (B, T)
    # bf16 MXU operands + fused weights -> allow modest numeric drift vs f32 reference.
    assert jnp.allclose(embeds, ref_embeds, atol=2e-2, rtol=2e-2)
    assert jnp.array_equal(mask, ref_mask)

    print("KERNEL_OK")
</pallas_src>

<mosaic_0001>
module attributes {stable_mosaic.version = 11 : i64} {
  func.func @_waveform_cond_kernel(%arg0: i32, %arg1: i32, %arg2: memref<2xi32, #tpu.memory_space<smem>>, %arg3: memref<1x4x8x16xbf16, #tpu.memory_space<vmem>>, %arg4: memref<4x16x128xbf16, #tpu.memory_space<vmem>>, %arg5: memref<1x128xf32, #tpu.memory_space<vmem>>, %arg6: memref<1x8x128xf32, #tpu.memory_space<vmem>>) attributes {dimension_semantics = [#tpu.dimension_semantics<parallel>, #tpu.dimension_semantics<parallel>], iteration_bounds = array<i64: 2, 1>, scalar_prefetch = 1 : i64, scratch_operands = 0 : i64, tpu.core_type = #tpu.core_type<tc>, window_params = [{transform_indices = @transform_0, window_bounds = array<i64: 1, 4, 8, 16>}, {pipeline_mode = #tpu.pipeline_mode<synchronous>, transform_indices = @transform_1, window_bounds = array<i64: 4, 16, 128>}, {pipeline_mode = #tpu.pipeline_mode<synchronous>, transform_indices = @transform_2, window_bounds = array<i64: 1, 128>}, {transform_indices = @transform_3, window_bounds = array<i64: 1, 8, 128>}]} {
    %c0 = arith.constant 0 : index
    %c0_0 = arith.constant 0 : index
    %c0_1 = arith.constant 0 : index
    %c0_2 = arith.constant 0 : index
    %0 = vector.load %arg3[%c0, %c0_0, %c0_1, %c0_2] : memref<1x4x8x16xbf16, #tpu.memory_space<vmem>>, vector<1x1x8x16xbf16>
    %1 = vector.shape_cast %0 : vector<1x1x8x16xbf16> to vector<8x16xbf16>
    %c0_3 = arith.constant 0 : index
    %c0_4 = arith.constant 0 : index
    %c0_5 = arith.constant 0 : index
    %2 = vector.load %arg4[%c0_3, %c0_4, %c0_5] : memref<4x16x128xbf16, #tpu.memory_space<vmem>>, vector<1x16x128xbf16>
    %3 = vector.shape_cast %2 : vector<1x16x128xbf16> to vector<16x128xbf16>
    %cst = arith.constant dense<0.000000e+00> : vector<8x128xf32>
    %4 = tpu.matmul %1, %3, %cst {dimension_numbers = #tpu.dot_dimension_numbers<[1], [0], [0], [1], [0, 0, 1, 1], [], []>} : vector<8x16xbf16>, vector<16x128xbf16>, vector<8x128xf32> -> vector<8x128xf32>
    %c0_6 = arith.constant 0 : index
    %c1 = arith.constant 1 : index
    %c0_7 = arith.constant 0 : index
    %c0_8 = arith.constant 0 : index
    %5 = vector.load %arg3[%c0_6, %c1, %c0_7, %c0_8] : memref<1x4x8x16xbf16, #tpu.memory_space<vmem>>, vector<1x1x8x16xbf16>
    %6 = vector.shape_cast %5 : vector<1x1x8x16xbf16> to vector<8x16xbf16>
    %c1_9 = arith.constant 1 : index
    %c0_10 = arith.constant 0 : index
    %c0_11 = arith.constant 0 : index
    %7 = vector.load %arg4[%c1_9, %c0_10, %c0_11] : memref<4x16x128xbf16, #tpu.memory_space<vmem>>, vector<1x16x128xbf16>
    %8 = vector.shape_cast %7 : vector<1x16x128xbf16> to vector<16x128xbf16>
    %cst_12 = arith.constant dense<0.000000e+00> : vector<8x128xf32>
    %9 = tpu.matmul %6, %8, %cst_12 {dimension_numbers = #tpu.dot_dimension_numbers<[1], [0], [0], [1], [0, 0, 1, 1], [], []>} : vector<8x16xbf16>, vector<16x128xbf16>, vector<8x128xf32> -> vector<8x128xf32>
    %10 = arith.addf %4, %9 : vector<8x128xf32>
    %c0_13 = arith.constant 0 : index
    %c2 = arith.constant 2 : index
    %c0_14 = arith.constant 0 : index
    %c0_15 = arith.constant 0 : index
    %11 = vector.load %arg3[%c0_13, %c2, %c0_14, %c0_15] : memref<1x4x8x16xbf16, #tpu.memory_space<vmem>>, vector<1x1x8x16xbf16>
    %12 = vector.shape_cast %11 : vector<1x1x8x16xbf16> to vector<8x16xbf16>
    %c2_16 = arith.constant 2 : index
    %c0_17 = arith.constant 0 : index
    %c0_18 = arith.constant 0 : index
    %13 = vector.load %arg4[%c2_16, %c0_17, %c0_18] : memref<4x16x128xbf16, #tpu.memory_space<vmem>>, vector<1x16x128xbf16>
    %14 = vector.shape_cast %13 : vector<1x16x128xbf16> to vector<16x128xbf16>
    %cst_19 = arith.constant dense<0.000000e+00> : vector<8x128xf32>
    %15 = tpu.matmul %12, %14, %cst_19 {dimension_numbers = #tpu.dot_dimension_numbers<[1], [0], [0], [1], [0, 0, 1, 1], [], []>} : vector<8x16xbf16>, vector<16x128xbf16>, vector<8x128xf32> -> vector<8x128xf32>
    %16 = arith.addf %10, %15 : vector<8x128xf32>
    %c0_20 = arith.constant 0 : index
    %c3 = arith.constant 3 : index
    %c0_21 = arith.constant 0 : index
    %c0_22 = arith.constant 0 : index
    %17 = vector.load %arg3[%c0_20, %c3, %c0_21, %c0_22] : memref<1x4x8x16xbf16, #tpu.memory_space<vmem>>, vector<1x1x8x16xbf16>
    %18 = vector.shape_cast %17 : vector<1x1x8x16xbf16> to vector<8x16xbf16>
    %c3_23 = arith.constant 3 : index
    %c0_24 = arith.constant 0 : index
    %c0_25 = arith.constant 0 : index
    %19 = vector.load %arg4[%c3_23, %c0_24, %c0_25] : memref<4x16x128xbf16, #tpu.memory_space<vmem>>, vector<1x16x128xbf16>
    %20 = vector.shape_cast %19 : vector<1x16x128xbf16> to vector<16x128xbf16>
    %cst_26 = arith.constant dense<0.000000e+00> : vector<8x128xf32>
    %21 = tpu.matmul %18, %20, %cst_26 {dimension_numbers = #tpu.dot_dimension_numbers<[1], [0], [0], [1], [0, 0, 1, 1], [], []>} : vector<8x16xbf16>, vector<16x128xbf16>, vector<8x128xf32> -> vector<8x128xf32>
    %22 = arith.addf %16, %21 : vector<8x128xf32>
    %c0_27 = arith.constant 0 : index
    %c0_28 = arith.constant 0 : index
    %23 = vector.load %arg5[%c0_27, %c0_28] : memref<1x128xf32, #tpu.memory_space<vmem>>, vector<1x128xf32>
    %24 = vector.broadcast %23 : vector<1x128xf32> to vector<8x128xf32>
    %25 = arith.addf %22, %24 : vector<8x128xf32>
    %26 = tpu.iota {dimensions = array<i32: 0>} : vector<8x1xi32>
    %c8_i32 = arith.constant 8 : i32
    %27 = arith.muli %arg1, %c8_i32 : i32
    %28 = vector.broadcast %27 : i32 to vector<8x1xi32>
    %29 = arith.addi %26, %28 : vector<8x1xi32>
    %30 = arith.index_cast %arg0 : i32 to index
    %31 = memref.load %arg2[%30] : memref<2xi32, #tpu.memory_space<smem>>
    %32 = vector.broadcast %31 : i32 to vector<8x1xi32>
    %33 = arith.cmpi slt, %29, %32 : vector<8x1xi32>
    %34 = arith.extui %33 : vector<8x1xi1> to vector<8x1xi32>
    %35 = arith.sitofp %34 : vector<8x1xi32> to vector<8x1xf32>
    %36 = vector.broadcast %35 : vector<8x1xf32> to vector<8x128xf32>
    %37 = arith.mulf %25, %36 : vector<8x128xf32>
    %c0_29 = arith.constant 0 : index
    %c0_30 = arith.constant 0 : index
    %c0_31 = arith.constant 0 : index
    %38 = vector.load %arg6[%c0_29, %c0_30, %c0_31] : memref<1x8x128xf32, #tpu.memory_space<vmem>>, vector<1x8x128xf32>
    %39 = vector.shape_cast %38 : vector<1x8x128xf32> to vector<8x128xf32>
    %40 = vector.shape_cast %37 : vector<8x128xf32> to vector<1x8x128xf32>
    tpu.vector_store %arg6[%c0_29, %c0_30, %c0_31], %40 {strides = array<i32>} : memref<1x8x128xf32, #tpu.memory_space<vmem>>, vector<1x8x128xf32>,
    return
  }
  func.func @transform_0(%arg0: i32, %arg1: i32, %arg2: memref<2xi32, #tpu.memory_space<smem>>) -> (i32, i32, i32, i32) {
    %c0_i32 = arith.constant 0 : i32
    %c0_i32_0 = arith.constant 0 : i32
    %c0_i32_1 = arith.constant 0 : i32
    return %arg0, %c0_i32, %arg1, %c0_i32_0 : i32, i32, i32, i32
  }
  func.func @transform_1(%arg0: i32, %arg1: i32, %arg2: memref<2xi32, #tpu.memory_space<smem>>) -> (i32, i32, i32) {
    %c0_i32 = arith.constant 0 : i32
    %c0_i32_0 = arith.constant 0 : i32
    %c0_i32_1 = arith.constant 0 : i32
    %c0_i32_2 = arith.constant 0 : i32
    return %c0_i32, %c0_i32_0, %c0_i32_1 : i32, i32, i32
  }
  func.func @transform_2(%arg0: i32, %arg1: i32, %arg2: memref<2xi32, #tpu.memory_space<smem>>) -> (i32, i32) {
    %c0_i32 = arith.constant 0 : i32
    %c0_i32_0 = arith.constant 0 : i32
    %c0_i32_1 = arith.constant 0 : i32
    return %c0_i32, %c0_i32_0 : i32, i32
  }
  func.func @transform_3(%arg0: i32, %arg1: i32, %arg2: memref<2xi32, #tpu.memory_space<smem>>) -> (i32, i32, i32) {
    %c0_i32 = arith.constant 0 : i32
    %c0_i32_0 = arith.constant 0 : i32
    return %arg0, %arg1, %c0_i32 : i32, i32, i32
  }
}

</mosaic_0001>

<llo_original>
// kernel: tpu_custom_call.1
$region0: #{tpu_custom_call.1}
  #allocation0 [shape = 'u32[]', space=smem, size = 0x4, offset = 0x4, fixed_abs, tag = 'smem constant byte address 0x4 - core index']
  #allocation1 [shape = 'u32[144,128]{1,0:T(1,128)}', space=vmem, size = 0x12000, scoped, tag = 'internal scratch']
  #allocation2 [shape = 's32[1]{0}', space=sflag, size = 0x4, scoped, tag = 'scoped memory for tpu_custom_call.1']
  #allocation3 [shape = 'u8[512]{0}', space=smem, size = 0x200, scoped, tag = 'prefetched SMEM operand 0']
  %s0 = inlined_call_operand.hbm [shape: s32[2], index: 0, kind: input, shape index: {}]
  %s1 = inlined_call_operand.hbm [shape: bf16[2,4,8,16], index: 1, kind: input, shape index: {}]
  %s2 = inlined_call_operand.hbm [shape: bf16[4,16,128], index: 2, kind: input, shape index: {}]
  %s3 = inlined_call_operand.vmem [shape: f32[1,128], index: 3, kind: input, shape index: {}]
  %s4 = inlined_call_operand.hbm [shape: f32[2,8,128], index: 4, kind: output, shape index: {}]
  %s5 = sld [smem:[#allocation0]]
  $region53: #{tpu_custom_call.1} parent=0
    _
  %s7 = ssub.s32 1, %s5
  %s8 = scalar_select 0, %s7, %s5
  %10 = dma.hbm_to_smem %s0, 16, [#allocation3], [#allocation2]
  %11 = dma.done [#allocation2], 16
  %12 = sfence
  $region1: #{tpu_custom_call.1} parent=0
    #allocation4 [shape = 'u8[16384]{0}', space=vmem, size = 0x4000, scoped, tag = 'input window, operand 1']
    #allocation5 [shape = 's32[2]{0}', space=sflag, size = 0x8, scoped, tag = 'scoped memory for tpu_custom_call.1']
    #allocation6 [shape = 's32[2]{0}', space=sflag, size = 0x8, scoped, tag = 'scoped memory for tpu_custom_call.1']
    #allocation7 [shape = 'u8[16384]{0}', space=vmem, size = 0x4000, scoped, tag = 'input window, operand 2, single buffered']
    #allocation8 [shape = 's32[1]{0}', space=sflag, size = 0x4, scoped, tag = 'scoped memory for tpu_custom_call.1']
    #allocation9 [shape = 'u8[8192]{0}', space=vmem, size = 0x2000, scoped, tag = 'output window, operand 0']
    %13 = vsyncpa [#allocation5], 0
    %s14 = scalar_lea.sflag [#allocation5], 1
    %15 = vsyncpa %s14, 0
    %16 = vsyncpa [#allocation8], 0
    %17 = vsyncpa [#allocation6], 0
    %s18 = scalar_lea.sflag [#allocation6], 1
    %19 = vsyncpa %s18, 0
    loop: start=0, step=1, limit=4
    $region2: #{tpu_custom_call.1} parent=1 // loop_pre_header
      _
    $region3: #{tpu_custom_call.1} parent=1 // loop_header
      %s21 = sphi 0, %s25
      %p22 = scmp.ge.s32.totalorder %s21, 4
      %s28 = sphi 0, %s40
      %s29 = sphi 0, %s36
      %s30 = sphi 0, %s28
      %s31 = sphi 0, %s29
      %s32 = sphi 0, %s30
      %s33 = sphi 0, %s31
      %s45 = sphi 0, %s47
      %s48 = sphi 0, %s45
      %s49 = sphi 0, %s48
      %s65 = sphi 0, %s49
      %s69 = sphi 0, %s69
      %s71 = sphi 0, %s69
      %s72 = sphi 0, %s71
      %s86 = sphi 0, %s72
      %s90 = sphi 0, %s90
      %s92 = sphi 0, %s90
      %s93 = sphi 0, %s92
      %s107 = sphi 0, %s93
      %s115 = sphi 0, %s117
      %s118 = sphi 0, %s115
      %s119 = sphi 0, %s118
      %s135 = sphi 0, %s119
    $region4: #{tpu_custom_call.1} parent=1 // loop_header_branch
      %24 = sbr.rel (%p22) target = $region8
    $region5: #{tpu_custom_call.1} parent=1 // loop_body
      %s26 = ssub.s32 %s21, 1
      %s27 = ssub.s32 %s21, 2
      %s34 = sadd.s32 1, %s29
      %p35 = scmp.ge.s32.totalorder %s34, 1
      %s36 = scalar_select %p35, 0, %s34
      %s37 = sadd.s32 1, %s28
      %s38 = scalar_select %p35, %s37, %s28
      %p39 = scmp.ge.s32.totalorder %s38, 2
      %s40 = scalar_select %p39, 0, %s38
      %s41 = ssub.s32 %s28, %s40
      %s42 = ssub.s32 %s29, %s36
      %s43 = sor.u32 %s41, %s42
      %p44 = scmp.eq.s32.totalorder %s43, 0
      %s46 = sadd.s32 %s45, 1
      %s47 = scalar_select %p44, %s45, %s46
      %p50 = pneg %p44
      %p51 = scmp.eq.s32.totalorder %s21, 1
      %p52 = por %p50, %p51
      %p53 = scmp.ne.s32.totalorder %s45, %s48
      %p54 = scmp.eq.s32.totalorder %s21, 0
      %p55 = por %p53, %p54
      %p56 = scmp.ne.s32.totalorder %s45, %s48
      %p57 = scmp.eq.s32.totalorder %s26, 1
      %p58 = por %p56, %p57
      %p59 = scmp.ne.s32.totalorder %s48, %s49
      %p60 = scmp.eq.s32.totalorder %s26, 0
      %p61 = por %p59, %p60
      %p62 = scmp.ne.s32.totalorder %s48, %s49
      %p63 = scmp.eq.s32.totalorder %s27, 1
      %p64 = por %p62, %p63
      %p66 = scmp.ne.s32.totalorder %s49, %s65
      %p67 = scmp.eq.s32.totalorder %s27, 0
      %p68 = por %p66, %p67
      %s70 = sadd.s32 %s69, 1
      %p73 = scmp.eq.s32.totalorder %s21, 1
      %p74 = scmp.ne.s32.totalorder %s69, %s71
      %p75 = scmp.eq.s32.totalorder %s21, 0
      %p76 = por %p74, %p75
      %p77 = scmp.ne.s32.totalorder %s69, %s71
      %p78 = scmp.eq.s32.totalorder %s26, 1
      %p79 = por %p77, %p78
      %p80 = scmp.ne.s32.totalorder %s71, %s72
      %p81 = scmp.eq.s32.totalorder %s26, 0
      %p82 = por %p80, %p81
      %p83 = scmp.ne.s32.totalorder %s71, %s72
      %p84 = scmp.eq.s32.totalorder %s27, 1
      %p85 = por %p83, %p84
      %p87 = scmp.ne.s32.totalorder %s72, %s86
      %p88 = scmp.eq.s32.totalorder %s27, 0
      %p89 = por %p87, %p88
      %s91 = sadd.s32 %s90, 1
      %p94 = scmp.eq.s32.totalorder %s21, 1
      %p95 = scmp.ne.s32.totalorder %s90, %s92
      %p96 = scmp.eq.s32.totalorder %s21, 0
      %p97 = por %p95, %p96
      %p98 = scmp.ne.s32.totalorder %s90, %s92
      %p99 = scmp.eq.s32.totalorder %s26, 1
      %p100 = por %p98, %p99
      %p101 = scmp.ne.s32.totalorder %s92, %s93
      %p102 = scmp.eq.s32.totalorder %s26, 0
      %p103 = por %p101, %p102
      %p104 = scmp.ne.s32.totalorder %s92, %s93
      %p105 = scmp.eq.s32.totalorder %s27, 1
      %p106 = por %p104, %p105
      %p108 = scmp.ne.s32.totalorder %s93, %s107
      %p109 = scmp.eq.s32.totalorder %s27, 0
      %p110 = por %p108, %p109
      %s111 = ssub.s32 %s28, %s40
      %s112 = ssub.s32 %s29, %s36
      %s113 = sor.u32 %s111, %s112
      %p114 = scmp.eq.s32.totalorder %s113, 0
      %s116 = sadd.s32 %s115, 1
      %s117 = scalar_select %p114, %s115, %s116
      %p120 = pneg %p114
      %p121 = scmp.eq.s32.totalorder %s21, 1
      %p122 = por %p120, %p121
      %p123 = scmp.ne.s32.totalorder %s115, %s118
      %p124 = scmp.eq.s32.totalorder %s21, 0
      %p125 = por %p123, %p124
      %p126 = scmp.ne.s32.totalorder %s115, %s118
      %p127 = scmp.eq.s32.totalorder %s26, 1
      %p128 = por %p126, %p127
      %p129 = scmp.ne.s32.totalorder %s118, %s119
      %p130 = scmp.eq.s32.totalorder %s26, 0
      %p131 = por %p129, %p130
      %p132 = scmp.ne.s32.totalorder %s118, %s119
      %p133 = scmp.eq.s32.totalorder %s27, 1
      %p134 = por %p132, %p133
      %p136 = scmp.ne.s32.totalorder %s119, %s135
      %p137 = scmp.eq.s32.totalorder %s27, 0
      %p138 = por %p136, %p137
      %p139 = scmp.le.s32.totalorder 1, %s21
      %p140 = scmp.lt.s32.totalorder %s21, 3
      %p141 = pnand %p139, %p140
      %p142 = pneg %p141
      // Predicated region
      $region9: #{tpu_custom_call.1} parent=5 // pred_check
        _
      $region10: #{tpu_custom_call.1} parent=5 // pred_check_branch
        %144 = sbr.rel (%p141) target = $region12
      $region11: #{tpu_custom_call.1} parent=5 // pred_region
        %s145 = ssub.s32 %s21, 1
        // Predicated region
        $region13: #{tpu_custom_call.1} parent=11 // pred_check
          %p146 = pneg %p82
        $region14: #{tpu_custom_call.1} parent=11 // pred_check_branch
          %148 = sbr.rel (%p146) target = $region16
        $region15: #{tpu_custom_call.1} parent=11 // pred_region
          %s150 = ssub.s32 512, 512
          %151 = vsyncadd [#allocation8], %s150
          %s152 = sshll.u32 [#allocation7], 4
          %s153 = int_to_ptr.vmem [resolvable:$true] %s152
          %158 = dma.hbm_to_vmem [thread:$0]  %s2, 512, %s153, [#allocation8], 64, 64, 4
        $region16: #{tpu_custom_call.1} parent=11 // pred_fallthru
          _
        // Predicated region
        $region17: #{tpu_custom_call.1} parent=11 // pred_check
          %p159 = pneg %p103
        $region18: #{tpu_custom_call.1} parent=11 // pred_check_branch
          %161 = sbr.rel (%p159) target = $region20
        $region19: #{tpu_custom_call.1} parent=11 // pred_region
          _
        $region20: #{tpu_custom_call.1} parent=11 // pred_fallthru
          _
      $region12: #{tpu_custom_call.1} parent=5 // pred_fallthru
        _
      %p162 = scmp.lt.s32.totalorder %s21, 2
      // Predicated region
      $region21: #{tpu_custom_call.1} parent=5 // pred_check
        %p163 = pneg %p162
      $region22: #{tpu_custom_call.1} parent=5 // pred_check_branch
        %165 = sbr.rel (%p163) target = $region24
      $region23: #{tpu_custom_call.1} parent=5 // pred_region
        // Predicated region
        $region25: #{tpu_custom_call.1} parent=23 // pred_check
          %p166 = pneg %p55
        $region26: #{tpu_custom_call.1} parent=23 // pred_check_branch
          %168 = sbr.rel (%p166) target = $region28
        $region27: #{tpu_custom_call.1} parent=23 // pred_region
          %s169 = sand.u32 %s45, 1
          %s170 = scalar_lea.sflag [#allocation5], %s169
          %s171 = sand.u32 %s45, 1
          %s172 = smul.addr %s171, 16
          %s173 = scalar_lea.vmem [#allocation4], %s172
          %s175 = ssub.s32 256, 256
          %176 = vsyncadd %s170, %s175
          %s177 = smul.addr %s28, 4
          %s178 = sadd.s32 %s29, %s177
          %s179 = smul.addr %s178, 64
          %s180 = scalar_lea.hbm %s1, %s179
          %s181 = sshll.u32 %s173, 4
          %s182 = int_to_ptr.vmem [resolvable:$true] %s181
          %187 = dma.hbm_to_vmem [thread:$0]  %s180, 256, %s182, %s170, 64, 64, 4
        $region28: #{tpu_custom_call.1} parent=23 // pred_fallthru
          _
      $region24: #{tpu_custom_call.1} parent=5 // pred_fallthru
        _
      %p188 = scmp.le.s32.totalorder 1, %s21
      %p189 = scmp.lt.s32.totalorder %s21, 3
      %p190 = pnand %p188, %p189
      %p191 = pneg %p190
      // Predicated region
      $region29: #{tpu_custom_call.1} parent=5 // pred_check
        _
      $region30: #{tpu_custom_call.1} parent=5 // pred_check_branch
        %193 = sbr.rel (%p190) target = $region32
      $region31: #{tpu_custom_call.1} parent=5 // pred_region
        %s194 = ssub.s32 %s21, 1
        %s195 = sand.u32 %s48, 1
        %s196 = scalar_lea.sflag [#allocation5], %s195
        %s197 = sand.u32 %s48, 1
        %s198 = smul.addr %s197, 16
        %s199 = scalar_lea.vmem [#allocation4], %s198
        // Predicated region
        $region33: #{tpu_custom_call.1} parent=31 // pred_check
          %p200 = pneg %p61
        $region34: #{tpu_custom_call.1} parent=31 // pred_check_branch
          %202 = sbr.rel (%p200) target = $region36
        $region35: #{tpu_custom_call.1} parent=31 // pred_region
          %203 = dma.done %s196, 256
        $region36: #{tpu_custom_call.1} parent=31 // pred_fallthru
          _
        // Predicated region
        $region37: #{tpu_custom_call.1} parent=31 // pred_check
          %p204 = pneg %p82
        $region38: #{tpu_custom_call.1} parent=31 // pred_check_branch
          %206 = sbr.rel (%p204) target = $region40
        $region39: #{tpu_custom_call.1} parent=31 // pred_region
          %207 = dma.done [#allocation8], 512
        $region40: #{tpu_custom_call.1} parent=31 // pred_fallthru
          _
        %s208 = sand.u32 %s48, 1
        %s209 = scalar_lea.sflag [#allocation5], %s208
        %s210 = sand.u32 %s48, 1
        %s211 = smul.addr %s210, 16
        %s212 = scalar_lea.vmem [#allocation4], %s211
        %p213 = pneg %p61
        %p214 = pneg %p58
        %p215 = pneg %p82
        %p216 = pneg %p79
        %p217 = pneg %p103
        %p218 = pneg %p100
        %p219 = pneg %p131
        %p220 = pneg %p128
        %s221 = sand.u32 %s118, 1
        %s222 = scalar_lea.sflag [#allocation6], %s221
        %s223 = sand.u32 %s118, 1
        %s224 = smul.addr %s223, 8
        %s225 = scalar_lea.vmem [#allocation9], %s224
        %v227 = vld [vmem:[%s199] sm:$0xf]
        %v228 = vld [vmem:[#allocation7] sm:$0xf]
        %v229 = vld [vmem:[#allocation7 + $0x4] sm:$0xf]
        %s230 = scalar_lea.vmem %s199, 4 [#allocation4]
        %v231 = vld [vmem:[%s230] sm:$0xf]
        %s232 = scalar_lea.vmem [#allocation7], 8
        %v233 = vld [vmem:[%s232] sm:$0xf]
        %v234 = vld [vmem:[%s232 + $0x4] sm:$0xf]
        %v237 = vunpack.c.l.b16 %v233
        %v238 = vunpack.c.l.b16 %v234
        %v239 = vpack.c.b16 %v238, %v237
        %vm241 = vcmask 130048
        %v243 = vsel %vm241, %v231, 0
        %245 = vmatprep.subr.bf16.mxu0 0
        %246 = vmatpush1.bf16.msra.mxu0 0
        %247 = vmatprep.subr.bf16.mxu0 0
        %248 = vmatpush1.bf16.msra.mxu0 0
        %249 = vmatprep.subr.bf16.mxu0 0
        %250 = vmatpush1.bf16.msra.mxu0 0
        %251 = vmatprep.subr.bf16.mxu0 0
        %252 = vmatpush1.bf16.msra.mxu0 0
        %253 = vmatprep.subr.bf16.mxu0 0
        %254 = vmatpush1.bf16.msra.mxu0 0
        %255 = vmatprep.subr.bf16.mxu0 0
        %256 = vmatpush1.bf16.msra.mxu0 0
        %257 = vmatprep.subr.bf16.mxu0 0
        %258 = vmatpush1.bf16.msra.mxu0 0
        %259 = vmatprep.subr.bf16.mxu0 0
        %260 = vmatpush1.bf16.msra.mxu0 %v239
        %261 = vmatprep.subr.bf16.mxu0 0
        %262 = vmatpush2.bf16.msra.mxu0 0
        %263 = vmatprep.subr.bf16.mxu0 0
        %264 = vmatpush2.bf16.msra.mxu0 0
        %265 = vmatprep.subr.bf16.mxu0 0
        %266 = vmatpush2.bf16.msra.mxu0 0
        %267 = vmatprep.subr.bf16.mxu0 0
        %268 = vmatpush2.bf16.msra.mxu0 0
        %269 = vmatprep.subr.bf16.mxu0 0
        %270 = vmatpush2.bf16.msra.mxu0 0
        %271 = vmatprep.subr.bf16.mxu0 0
        %272 = vmatpush2.bf16.msra.mxu0 0
        %273 = vmatprep.subr.bf16.mxu0 0
        %274 = vmatpush2.bf16.msra.mxu0 0
        %275 = vmatprep.subr.bf16.mxu0 0
        %276 = vmatpush2.bf16.msra.mxu0 0
        %277 = vmatprep.mubr.bf16.mxu0 0
        %278 = vmatmul.mubr.bf16.gmra.mxu0 %v243
        %v279 = vpop.f32.mrf.mxu0
        %v280 = vadd.f32 0.0, %v279
        %v281 = vpop.f32.mrf.mxu0
        %v282 = vpop.f32.mrf.mxu0
        %v283 = vpop.f32.mrf.mxu0
        %284 = vdwg.mxu0
        %v287 = vunpack.c.l.b16 %v228
        %v288 = vunpack.c.l.b16 %v229
        %v289 = vpack.c.b16 %v288, %v287
        %v292 = vsel %vm241, %v227, 0
        %294 = vmatprep.subr.bf16.mxu0 0
        %295 = vmatpush1.bf16.msra.mxu0 0
        %296 = vmatprep.subr.bf16.mxu0 0
        %297 = vmatpush1.bf16.msra.mxu0 0
        %298 = vmatprep.subr.bf16.mxu0 0
        %299 = vmatpush1.bf16.msra.mxu0 0
        %300 = vmatprep.subr.bf16.mxu0 0
        %301 = vmatpush1.bf16.msra.mxu0 0
        %302 = vmatprep.subr.bf16.mxu0 0
        %303 = vmatpush1.bf16.msra.mxu0 0
        %304 = vmatprep.subr.bf16.mxu0 0
        %305 = vmatpush1.bf16.msra.mxu0 0
        %306 = vmatprep.subr.bf16.mxu0 0
        %307 = vmatpush1.bf16.msra.mxu0 0
        %308 = vmatprep.subr.bf16.mxu0 0
        %309 = vmatpush1.bf16.msra.mxu0 %v289
        %310 = vmatprep.subr.bf16.mxu0 0
        %311 = vmatpush2.bf16.msra.mxu0 0
        %312 = vmatprep.subr.bf16.mxu0 0
        %313 = vmatpush2.bf16.msra.mxu0 0
        %314 = vmatprep.subr.bf16.mxu0 0
        %315 = vmatpush2.bf16.msra.mxu0 0
        %316 = vmatprep.subr.bf16.mxu0 0
        %317 = vmatpush2.bf16.msra.mxu0 0
        %318 = vmatprep.subr.bf16.mxu0 0
        %319 = vmatpush2.bf16.msra.mxu0 0
        %320 = vmatprep.subr.bf16.mxu0 0
        %321 = vmatpush2.bf16.msra.mxu0 0
        %322 = vmatprep.subr.bf16.mxu0 0
        %323 = vmatpush2.bf16.msra.mxu0 0
        %324 = vmatprep.subr.bf16.mxu0 0
        %325 = vmatpush2.bf16.msra.mxu0 0
        %326 = vmatprep.mubr.bf16.mxu0 0
        %327 = vmatmul.mubr.bf16.gmra.mxu0 %v292
        %v328 = vpop.f32.mrf.mxu0
        %v329 = vadd.f32 %v280, %v328
        %v330 = vpop.f32.mrf.mxu0
        %v331 = vpop.f32.mrf.mxu0
        %v332 = vpop.f32.mrf.mxu0
        %333 = vdwg.mxu0
        %s334 = scalar_lea.vmem %s199, 8 [#allocation4]
        %v335 = vld [vmem:[%s334] sm:$0xf]
        %s336 = scalar_lea.vmem [#allocation7], 16
        %v337 = vld [vmem:[%s336] sm:$0xf]
        %v338 = vld [vmem:[%s336 + $0x4] sm:$0xf]
        %v341 = vunpack.c.l.b16 %v337
        %v342 = vunpack.c.l.b16 %v338
        %v343 = vpack.c.b16 %v342, %v341
        %v346 = vsel %vm241, %v335, 0
        %348 = vmatprep.subr.bf16.mxu0 0
        %349 = vmatpush1.bf16.msra.mxu0 0
        %350 = vmatprep.subr.bf16.mxu0 0
        %351 = vmatpush1.bf16.msra.mxu0 0
        %352 = vmatprep.subr.bf16.mxu0 0
        %353 = vmatpush1.bf16.msra.mxu0 0
        %354 = vmatprep.subr.bf16.mxu0 0
        %355 = vmatpush1.bf16.msra.mxu0 0
        %356 = vmatprep.subr.bf16.mxu0 0
        %357 = vmatpush1.bf16.msra.mxu0 0
        %358 = vmatprep.subr.bf16.mxu0 0
        %359 = vmatpush1.bf16.msra.mxu0 0
        %360 = vmatprep.subr.bf16.mxu0 0
        %361 = vmatpush1.bf16.msra.mxu0 0
        %362 = vmatprep.subr.bf16.mxu0 0
        %363 = vmatpush1.bf16.msra.mxu0 %v343
        %364 = vmatprep.subr.bf16.mxu0 0
        %365 = vmatpush2.bf16.msra.mxu0 0
        %366 = vmatprep.subr.bf16.mxu0 0
        %367 = vmatpush2.bf16.msra.mxu0 0
        %368 = vmatprep.subr.bf16.mxu0 0
        %369 = vmatpush2.bf16.msra.mxu0 0
        %370 = vmatprep.subr.bf16.mxu0 0
        %371 = vmatpush2.bf16.msra.mxu0 0
        %372 = vmatprep.subr.bf16.mxu0 0
        %373 = vmatpush2.bf16.msra.mxu0 0
        %374 = vmatprep.subr.bf16.mxu0 0
        %375 = vmatpush2.bf16.msra.mxu0 0
        %376 = vmatprep.subr.bf16.mxu0 0
        %377 = vmatpush2.bf16.msra.mxu0 0
        %378 = vmatprep.subr.bf16.mxu0 0
        %379 = vmatpush2.bf16.msra.mxu0 0
        %380 = vmatprep.mubr.bf16.mxu0 0
        %381 = vmatmul.mubr.bf16.gmra.mxu0 %v346
        %v382 = vpop.f32.mrf.mxu0
        %v383 = vadd.f32 0.0, %v382
        %v384 = vpop.f32.mrf.mxu0
        %v385 = vpop.f32.mrf.mxu0
        %v386 = vpop.f32.mrf.mxu0
        %387 = vdwg.mxu0
        %v388 = vadd.f32 %v329, %v383
        %s389 = scalar_lea.vmem %s199, 12 [#allocation4]
        %v390 = vld [vmem:[%s389] sm:$0xf]
        %s391 = scalar_lea.vmem [#allocation7], 24
        %v392 = vld [vmem:[%s391] sm:$0xf]
        %v393 = vld [vmem:[%s391 + $0x4] sm:$0xf]
        %v396 = vunpack.c.l.b16 %v392
        %v397 = vunpack.c.l.b16 %v393
        %v398 = vpack.c.b16 %v397, %v396
        %v401 = vsel %vm241, %v390, 0
        %403 = vmatprep.subr.bf16.mxu0 0
        %404 = vmatpush1.bf16.msra.mxu0 0
        %405 = vmatprep.subr.bf16.mxu0 0
        %406 = vmatpush1.bf16.msra.mxu0 0
        %407 = vmatprep.subr.bf16.mxu0 0
        %408 = vmatpush1.bf16.msra.mxu0 0
        %409 = vmatprep.subr.bf16.mxu0 0
        %410 = vmatpush1.bf16.msra.mxu0 0
        %411 = vmatprep.subr.bf16.mxu0 0
        %412 = vmatpush1.bf16.msra.mxu0 0
        %413 = vmatprep.subr.bf16.mxu0 0
        %414 = vmatpush1.bf16.msra.mxu0 0
        %415 = vmatprep.subr.bf16.mxu0 0
        %416 = vmatpush1.bf16.msra.mxu0 0
        %417 = vmatprep.subr.bf16.mxu0 0
        %418 = vmatpush1.bf16.msra.mxu0 %v398
        %419 = vmatprep.subr.bf16.mxu0 0
        %420 = vmatpush2.bf16.msra.mxu0 0
        %421 = vmatprep.subr.bf16.mxu0 0
        %422 = vmatpush2.bf16.msra.mxu0 0
        %423 = vmatprep.subr.bf16.mxu0 0
        %424 = vmatpush2.bf16.msra.mxu0 0
        %425 = vmatprep.subr.bf16.mxu0 0
        %426 = vmatpush2.bf16.msra.mxu0 0
        %427 = vmatprep.subr.bf16.mxu0 0
        %428 = vmatpush2.bf16.msra.mxu0 0
        %429 = vmatprep.subr.bf16.mxu0 0
        %430 = vmatpush2.bf16.msra.mxu0 0
        %431 = vmatprep.subr.bf16.mxu0 0
        %432 = vmatpush2.bf16.msra.mxu0 0
        %433 = vmatprep.subr.bf16.mxu0 0
        %434 = vmatpush2.bf16.msra.mxu0 0
        %435 = vmatprep.mubr.bf16.mxu0 0
        %436 = vmatmul.mubr.bf16.gmra.mxu0 %v401
        %v437 = vpop.f32.mrf.mxu0
        %v438 = vadd.f32 0.0, %v437
        %v439 = vpop.f32.mrf.mxu0
        %v440 = vpop.f32.mrf.mxu0
        %v441 = vpop.f32.mrf.mxu0
        %442 = vdwg.mxu0
        %v443 = vadd.f32 %v388, %v438
        %v444 = vld [vmem:[%s3] sm:$0x1]
        %v446 = vlaneseq
        %v447 = vshrl.u32 %v446, 7
        %v448 = vsub.s32 0, %v447
        %v449 = vrot.slane %v444, %v448
        %v451 = vadd.f32 %v443, %v449
        %v452 = vlaneseq
        %v453 = vshrl.u32 %v452, 7
        %s454 = smul.u32 %s31, 8
        %v455 = vstv %s454
        %v456 = vadd.s32 %v453, %v455
        %s457 = sld [smem:[#allocation3 + %s30]]
        %v458 = vstv %s457
        %vm459 = vcmp.lt.s32.totalorder %v456, %v458
        %v460 = vsel %vm459, 1, 0
        %v461 = vcvt.s32.f32 %v460
        %v462 = vmul.f32 %v451, %v461
        %463 = vst [vmem:[%s225] sm:$0xff] %v462
        %s464 = sand.u32 %s118, 1
        %s465 = scalar_lea.sflag [#allocation6], %s464
        %s466 = sand.u32 %s118, 1
        %s467 = smul.addr %s466, 8
        %s468 = scalar_lea.vmem [#allocation9], %s467
        // Predicated region
        $region41: #{tpu_custom_call.1} parent=31 // pred_check
          %p469 = pneg %p128
        $region42: #{tpu_custom_call.1} parent=31 // pred_check_branch
          %471 = sbr.rel (%p469) target = $region44
        $region43: #{tpu_custom_call.1} parent=31 // pred_region
          %s473 = ssub.s32 128, 128
          %474 = vsyncadd %s465, %s473
          %s475 = sadd.s32 %s31, %s30
          %s476 = smul.addr %s475, 128
          %s477 = scalar_lea.hbm %s4, %s476
          %s479 = sshll.u32 %s468, 4
          %s480 = int_to_ptr.vmem [resolvable:$true] %s479
          %482 = dma.vmem_to_hbm [thread:$0]  %s480, 128, %s477, %s465
        $region44: #{tpu_custom_call.1} parent=31 // pred_fallthru
          _
      $region32: #{tpu_custom_call.1} parent=5 // pred_fallthru
        _
      %p483 = scmp.le.s32.totalorder 2, %s21
      // Predicated region
      $region45: #{tpu_custom_call.1} parent=5 // pred_check
        %p484 = pneg %p483
      $region46: #{tpu_custom_call.1} parent=5 // pred_check_branch
        %486 = sbr.rel (%p484) target = $region48
      $region47: #{tpu_custom_call.1} parent=5 // pred_region
        %s487 = ssub.s32 %s21, 2
        // Predicated region
        $region49: #{tpu_custom_call.1} parent=47 // pred_check
          %p488 = pneg %p134
        $region50: #{tpu_custom_call.1} parent=47 // pred_check_branch
          %490 = sbr.rel (%p488) target = $region52
        $region51: #{tpu_custom_call.1} parent=47 // pred_region
          %s491 = sand.u32 %s119, 1
          %s492 = scalar_lea.sflag [#allocation6], %s491
          %s493 = sand.u32 %s119, 1
          %s494 = smul.addr %s493, 8
          %s495 = scalar_lea.vmem [#allocation9], %s494
          %496 = dma.done %s492, 128
        $region52: #{tpu_custom_call.1} parent=47 // pred_fallthru
          _
      $region48: #{tpu_custom_call.1} parent=5 // pred_fallthru
        _
    $region6: #{tpu_custom_call.1} parent=1 // loop_footer
      %s25 = sadd.s32 1, %s21
    $region7: #{tpu_custom_call.1} parent=1 // loop_footer_branch
      %20 = sbr.rel target = $region3
    $region8: #{tpu_custom_call.1} parent=1 // loop_exit
      _
    %497 = vsyncpa [#allocation5], 1
    %s498 = scalar_lea.sflag [#allocation5], 1
    %499 = vsyncpa %s498, 1
    %500 = vsyncpa [#allocation8], 1
    %501 = vsyncpa [#allocation6], 1
    %s502 = scalar_lea.sflag [#allocation6], 1
    %503 = vsyncpa %s502, 1

</llo_original>
